<compile_context>
chip_gen: v6e
topology: v6e:2x2x1
jax: 0.10.0
libtpu: 0.0.40
codegen_flags: <defaults>
</compile_context>

<pallas_src>
import math
from functools import partial, reduce

import jax
import jax.numpy as jnp
from jax.experimental import pallas as pl
from jax.experimental.pallas import tpu as pltpu


def _round_up(x, m):
    return (x + m - 1) // m * m


def _sublane_multiple(dtype):
    itemsize = jnp.dtype(dtype).itemsize
    return {4: 8, 2: 16, 1: 32}.get(itemsize, 8)


# --------------------------------- Pallas kernel ---------------------------------

def _unzip_kernel(p_ref, band_ref, fader_ref, *, n_band_params):
    # p_ref: (tM, s_param)   band_ref: (tM, nb)   fader_ref: (tM, nf)
    # One load of the row tile feeds both outputs (single pass over the data).
    p = p_ref[...]
    band_ref[...] = p[:, :n_band_params]
    fader_ref[...] = p[:, n_band_params:]


def _unzip_pallas(flat, n_band_params, n_fader_params):
    """flat: (N, s_param) -> (band (N, nb), fader (N, nf)) via one pallas_call."""
    N, S = flat.shape
    sub = _sublane_multiple(flat.dtype)

    # Row tile: big enough that DMA time dominates the ~0.35us per-step overhead,
    # capped at 4096 so the lane-padded double-buffered working set (~12 MiB at
    # f32) fits v7x's 32 MiB scoped-VMEM default; aim for >=2 grid steps so the
    # "parallel" axis can shard over v7x's two TensorCores.
    tM = max(sub, min(4096, _round_up(pl.cdiv(N, 2), sub)))
    grid = (pl.cdiv(N, tM),)  # ragged last block handled by Pallas; no pad / crop

    band, fader = pl.pallas_call(
        partial(_unzip_kernel, n_band_params=n_band_params),
        out_shape=(jax.ShapeDtypeStruct((N, n_band_params), flat.dtype),
                   jax.ShapeDtypeStruct((N, n_fader_params), flat.dtype)),
        grid_spec=pltpu.PrefetchScalarGridSpec(
            num_scalar_prefetch=0,
            grid=grid,
            in_specs=[pl.BlockSpec((tM, S), lambda i: (i, 0))],
            out_specs=(pl.BlockSpec((tM, n_band_params), lambda i: (i, 0)),
                       pl.BlockSpec((tM, n_fader_params), lambda i: (i, 0))),
        ),
        compiler_params=pltpu.CompilerParams(
            dimension_semantics=("parallel",)),  # row tiles shard over v7x's 2 TCs
    )(flat)
    return band, fader


# ------------------------------------ wrapper ------------------------------------

class Unzipper:
    """JAX/Pallas port of djtransgan Unzipper (forward pass only)."""

    # Below this flattened row count a kernel launch costs far more than the
    # ~N*56 bytes it moves; XLA slices fuse into consumers for ~zero cost.
    _PALLAS_MIN_ROWS = 1 << 17

    def __init__(self, n_band=4, n_fader=1, n_param=2):
        self.shape = {'band': (n_band - 1, 2), 'fader': (n_band, n_fader, n_param)}
        self.n_params = {k: reduce(lambda x, y: x * y, v) for k, v in self.shape.items()}
        self.s_param = reduce(lambda x, y: x + y, self.n_params.values())

    def __call__(self, params, force_pallas=False):
        assert params.shape[-1] == self.s_param
        flat = params.reshape(-1, self.s_param)
        nb, nf = self.n_params['band'], self.n_params['fader']

        unzip = {}
        if nb == 0:
            # pure view in the original module -> no kernel needed
            unzip['fader'] = flat
        elif nf == 0:
            unzip['band'] = flat
        else:
            N = flat.shape[0]
            if (force_pallas and N > 0) or N >= self._PALLAS_MIN_ROWS:
                band, fader = _unzip_pallas(flat, nb, nf)
            else:
                # fast path: fused XLA slices == torch.split views
                band, fader = flat[:, :nb], flat[:, nb:]
            unzip['band'] = band
            unzip['fader'] = fader

        return {k: unzip[k].reshape((-1,) + self.shape[k]) for k in unzip}


# ------------------------------------- demo --------------------------------------

if __name__ == "__main__":
    k1, k2 = jax.random.split(jax.random.PRNGKey(0))

    n_band, n_fader, n_param = 4, 1, 2
    unzipper = Unzipper(n_band=n_band, n_fader=n_fader, n_param=n_param)

    # 1) model-realistic tiny batch -> fused-XLA-slice fast path
    B = 2
    params_small = jax.random.normal(k1, (B, unzipper.s_param), dtype=jnp.float32)  # (2, 14)
    out_small = unzipper(params_small)
    jax.block_until_ready(out_small['band'])
    jax.block_until_ready(out_small['fader'])

    assert out_small['band'].shape == (B, n_band - 1, 2)
    assert out_small['fader'].shape == (B, n_band, n_fader, n_param)
    nb = unzipper.n_params['band']
    ref_b = params_small[:, :nb].reshape((-1, n_band - 1, 2))
    ref_f = params_small[:, nb:].reshape((-1, n_band, n_fader, n_param))
    assert bool(jnp.all(out_small['band'] == ref_b))
    assert bool(jnp.all(out_small['fader'] == ref_f))

    # 2) larger flattened batch, forced through the Pallas kernel
    params_big = jax.random.normal(k2, (8, 64, unzipper.s_param), dtype=jnp.float32)  # (8, 64, 14)
    out_big = unzipper(params_big, force_pallas=True)
    jax.block_until_ready(out_big['band'])
    jax.block_until_ready(out_big['fader'])

    flat_big = params_big.reshape(-1, unzipper.s_param)
    ref_bb = flat_big[:, :nb].reshape((-1, n_band - 1, 2))
    ref_bf = flat_big[:, nb:].reshape((-1, n_band, n_fader, n_param))
    assert out_big['band'].shape == ref_bb.shape
    assert out_big['fader'].shape == ref_bf.shape
    assert bool(jnp.all(out_big['band'] == ref_bb))
    assert bool(jnp.all(out_big['fader'] == ref_bf))

    print("KERNEL_OK")
</pallas_src>

<mosaic_0001>
module attributes {stable_mosaic.version = 11 : i64} {
  func.func @_unzip_kernel(%arg0: i32, %arg1: memref<256x14xf32, #tpu.memory_space<vmem>>, %arg2: memref<256x6xf32, #tpu.memory_space<vmem>>, %arg3: memref<256x8xf32, #tpu.memory_space<vmem>>) attributes {dimension_semantics = [#tpu.dimension_semantics<parallel>], iteration_bounds = array<i64: 2>, scalar_prefetch = 0 : i64, scratch_operands = 0 : i64, tpu.core_type = #tpu.core_type<tc>, window_params = [{transform_indices = @transform_0, window_bounds = array<i64: 256, 14>}, {transform_indices = @transform_1, window_bounds = array<i64: 256, 6>}, {transform_indices = @transform_2, window_bounds = array<i64: 256, 8>}]} {
    %c0 = arith.constant 0 : index
    %c0_0 = arith.constant 0 : index
    %0 = vector.load %arg1[%c0, %c0_0] : memref<256x14xf32, #tpu.memory_space<vmem>>, vector<256x14xf32>
    %1 = vector.extract_strided_slice %0 {offsets = [0, 0], sizes = [256, 6], strides = [1, 1]} : vector<256x14xf32> to vector<256x6xf32>
    %c0_1 = arith.constant 0 : index
    %c0_2 = arith.constant 0 : index
    %2 = vector.load %arg2[%c0_1, %c0_2] : memref<256x6xf32, #tpu.memory_space<vmem>>, vector<256x6xf32>
    tpu.vector_store %arg2[%c0_1, %c0_2], %1 {strides = array<i32>} : memref<256x6xf32, #tpu.memory_space<vmem>>, vector<256x6xf32>,
    %3 = vector.extract_strided_slice %0 {offsets = [0, 6], sizes = [256, 8], strides = [1, 1]} : vector<256x14xf32> to vector<256x8xf32>
    %c0_3 = arith.constant 0 : index
    %c0_4 = arith.constant 0 : index
    %4 = vector.load %arg3[%c0_3, %c0_4] : memref<256x8xf32, #tpu.memory_space<vmem>>, vector<256x8xf32>
    tpu.vector_store %arg3[%c0_3, %c0_4], %3 {strides = array<i32>} : memref<256x8xf32, #tpu.memory_space<vmem>>, vector<256x8xf32>,
    return
  }
  func.func @transform_0(%arg0: i32) -> (i32, i32) {
    %c0_i32 = arith.constant 0 : i32
    %c0_i32_0 = arith.constant 0 : i32
    return %arg0, %c0_i32 : i32, i32
  }
  func.func @transform_1(%arg0: i32) -> (i32, i32) {
    %c0_i32 = arith.constant 0 : i32
    %c0_i32_0 = arith.constant 0 : i32
    return %arg0, %c0_i32 : i32, i32
  }
  func.func @transform_2(%arg0: i32) -> (i32, i32) {
    %c0_i32 = arith.constant 0 : i32
    %c0_i32_0 = arith.constant 0 : i32
    return %arg0, %c0_i32 : i32, i32
  }
}

</mosaic_0001>

<llo_original>
// kernel: tpu_custom_call.1
$region0: #{tpu_custom_call.1}
  #allocation0 [shape = 'u32[]', space=smem, size = 0x4, offset = 0x4, fixed_abs, tag = 'smem constant byte address 0x4 - core index']
  #allocation1 [shape = 'u32[144,128]{1,0:T(1,128)}', space=vmem, size = 0x12000, scoped, tag = 'internal scratch']
  %s0 = inlined_call_operand.vmem [shape: f32[512,14], index: 0, kind: input, shape index: {}]
  %s1 = inlined_call_operand.vmem [shape: f32[512,6], index: 1, kind: output, shape index: {0}]
  %s2 = inlined_call_operand.vmem [shape: f32[512,8], index: 2, kind: output, shape index: {1}]
  %3 = xla_tuple %s1, %s2
  %s4 = sld [smem:[#allocation0]]
  $region45: #{tpu_custom_call.1} parent=0
    _
  %s6 = ssub.s32 1, %s4
  %s7 = scalar_select 0, %s6, %s4
  loop: start=0, step=1, limit=4
  $region2: #{tpu_custom_call.1} parent=0 // loop_pre_header
    _
  $region3: #{tpu_custom_call.1} parent=0 // loop_header
    %s9 = sphi 0, %s13
    %p10 = scmp.ge.s32.totalorder %s9, 4
    %s19 = sphi 0, %s21
    %s22 = sphi 0, %s19
    %s23 = sphi 0, %s22
    %s39 = sphi 0, %s23
    %s45 = sphi 0, %s47
    %s48 = sphi 0, %s45
    %s49 = sphi 0, %s48
    %s65 = sphi 0, %s49
    %s71 = sphi 0, %s73
    %s74 = sphi 0, %s71
    %s75 = sphi 0, %s74
    %s91 = sphi 0, %s75
  $region4: #{tpu_custom_call.1} parent=0 // loop_header_branch
    %12 = sbr.rel (%p10) target = $region8
  $region5: #{tpu_custom_call.1} parent=0 // loop_body
    %s14 = ssub.s32 %s9, 1
    %s15 = ssub.s32 %s9, 2
    %s16 = sadd.s32 %s9, 1
    %s17 = ssub.s32 %s9, %s16
    %p18 = scmp.eq.s32.totalorder %s17, 0
    %s20 = sadd.s32 %s19, 1
    %s21 = scalar_select %p18, %s19, %s20
    %p24 = pneg %p18
    %p25 = scmp.eq.s32.totalorder %s9, 1
    %p26 = por %p24, %p25
    %p27 = scmp.ne.s32.totalorder %s19, %s22
    %p28 = scmp.eq.s32.totalorder %s9, 0
    %p29 = por %p27, %p28
    %p30 = scmp.ne.s32.totalorder %s19, %s22
    %p31 = scmp.eq.s32.totalorder %s14, 1
    %p32 = por %p30, %p31
    %p33 = scmp.ne.s32.totalorder %s22, %s23
    %p34 = scmp.eq.s32.totalorder %s14, 0
    %p35 = por %p33, %p34
    %p36 = scmp.ne.s32.totalorder %s22, %s23
    %p37 = scmp.eq.s32.totalorder %s15, 1
    %p38 = por %p36, %p37
    %p40 = scmp.ne.s32.totalorder %s23, %s39
    %p41 = scmp.eq.s32.totalorder %s15, 0
    %p42 = por %p40, %p41
    %s43 = ssub.s32 %s9, %s16
    %p44 = scmp.eq.s32.totalorder %s43, 0
    %s46 = sadd.s32 %s45, 1
    %s47 = scalar_select %p44, %s45, %s46
    %p50 = pneg %p44
    %p51 = scmp.eq.s32.totalorder %s9, 1
    %p52 = por %p50, %p51
    %p53 = scmp.ne.s32.totalorder %s45, %s48
    %p54 = scmp.eq.s32.totalorder %s9, 0
    %p55 = por %p53, %p54
    %p56 = scmp.ne.s32.totalorder %s45, %s48
    %p57 = scmp.eq.s32.totalorder %s14, 1
    %p58 = por %p56, %p57
    %p59 = scmp.ne.s32.totalorder %s48, %s49
    %p60 = scmp.eq.s32.totalorder %s14, 0
    %p61 = por %p59, %p60
    %p62 = scmp.ne.s32.totalorder %s48, %s49
    %p63 = scmp.eq.s32.totalorder %s15, 1
    %p64 = por %p62, %p63
    %p66 = scmp.ne.s32.totalorder %s49, %s65
    %p67 = scmp.eq.s32.totalorder %s15, 0
    %p68 = por %p66, %p67
    %s69 = ssub.s32 %s9, %s16
    %p70 = scmp.eq.s32.totalorder %s69, 0
    %s72 = sadd.s32 %s71, 1
    %s73 = scalar_select %p70, %s71, %s72
    %p76 = pneg %p70
    %p77 = scmp.eq.s32.totalorder %s9, 1
    %p78 = por %p76, %p77
    %p79 = scmp.ne.s32.totalorder %s71, %s74
    %p80 = scmp.eq.s32.totalorder %s9, 0
    %p81 = por %p79, %p80
    %p82 = scmp.ne.s32.totalorder %s71, %s74
    %p83 = scmp.eq.s32.totalorder %s14, 1
    %p84 = por %p82, %p83
    %p85 = scmp.ne.s32.totalorder %s74, %s75
    %p86 = scmp.eq.s32.totalorder %s14, 0
    %p87 = por %p85, %p86
    %p88 = scmp.ne.s32.totalorder %s74, %s75
    %p89 = scmp.eq.s32.totalorder %s15, 1
    %p90 = por %p88, %p89
    %p92 = scmp.ne.s32.totalorder %s75, %s91
    %p93 = scmp.eq.s32.totalorder %s15, 0
    %p94 = por %p92, %p93
    %p95 = scmp.le.s32.totalorder 1, %s9
    %p96 = scmp.lt.s32.totalorder %s9, 3
    %p97 = pnand %p95, %p96
    %p98 = pneg %p97
    // Predicated region
    $region9: #{tpu_custom_call.1} parent=5 // pred_check
      _
    $region10: #{tpu_custom_call.1} parent=5 // pred_check_branch
      %100 = sbr.rel (%p97) target = $region12
    $region11: #{tpu_custom_call.1} parent=5 // pred_region
      %s101 = ssub.s32 %s9, 1
    $region12: #{tpu_custom_call.1} parent=5 // pred_fallthru
      _
    %p102 = scmp.lt.s32.totalorder %s9, 2
    // Predicated region
    $region13: #{tpu_custom_call.1} parent=5 // pred_check
      %p103 = pneg %p102
    $region14: #{tpu_custom_call.1} parent=5 // pred_check_branch
      %105 = sbr.rel (%p103) target = $region16
    $region15: #{tpu_custom_call.1} parent=5 // pred_region
      // Predicated region
      $region17: #{tpu_custom_call.1} parent=15 // pred_check
        %p106 = pneg %p29
      $region18: #{tpu_custom_call.1} parent=15 // pred_check_branch
        %108 = sbr.rel (%p106) target = $region20
      $region19: #{tpu_custom_call.1} parent=15 // pred_region
        %s109 = smul.u32 32, %s9
        %p110 = scmp.lt.s32.totalorder %s109, 63
        %s111 = scalar_select %p110, %s109, 63
        %s112 = smul.addr %s111, 8
        %s113 = scalar_lea.vmem %s0, %s112
        %s114 = smul.u32 32, %s9
      $region20: #{tpu_custom_call.1} parent=15 // pred_fallthru
        _
    $region16: #{tpu_custom_call.1} parent=5 // pred_fallthru
      _
    %p115 = scmp.le.s32.totalorder 1, %s9
    %p116 = scmp.lt.s32.totalorder %s9, 3
    %p117 = pnand %p115, %p116
    %p118 = pneg %p117
    // Predicated region
    $region21: #{tpu_custom_call.1} parent=5 // pred_check
      _
    $region22: #{tpu_custom_call.1} parent=5 // pred_check_branch
      %120 = sbr.rel (%p117) target = $region24
    $region23: #{tpu_custom_call.1} parent=5 // pred_region
      %s121 = ssub.s32 %s9, 1
      %s122 = smul.u32 32, %s14
      %p123 = scmp.lt.s32.totalorder %s122, 63
      %s124 = scalar_select %p123, %s122, 63
      %s125 = smul.addr %s124, 8
      %s126 = scalar_lea.vmem %s0, %s125
      %p127 = pneg %p35
      %p128 = pneg %p32
      %p129 = pneg %p61
      %p130 = pneg %p58
      %s131 = smul.u32 32, %s14
      %p132 = scmp.lt.s32.totalorder %s131, 63
      %s133 = scalar_select %p132, %s131, 63
      %s134 = smul.addr %s133, 8
      %s135 = scalar_lea.vmem %s1, %s134
      %p136 = pneg %p87
      %p137 = pneg %p84
      %s138 = smul.u32 32, %s14
      %p139 = scmp.lt.s32.totalorder %s138, 63
      %s140 = scalar_select %p139, %s138, 63
      %s141 = smul.addr %s140, 8
      %s142 = scalar_lea.vmem %s2, %s141
      %s143 = smul.u32 32, %s14
      %p144 = scmp.lt.s32.totalorder %s143, 63
      %s145 = scalar_select %p144, %s143, 63
      %s146 = smul.addr %s145, 8
      %s147 = scalar_lea.vmem %s0, %s146
      %s148 = smul.u32 32, %s14
      %s149 = smul.u32 32, %s14
      %p150 = scmp.lt.s32.totalorder %s149, 63
      %s151 = scalar_select %p150, %s149, 63
      %s152 = smul.addr %s151, 8
      %s153 = scalar_lea.vmem %s1, %s152
      %s154 = smul.u32 32, %s14
      %s155 = smul.u32 32, %s14
      %p156 = scmp.lt.s32.totalorder %s155, 63
      %s157 = scalar_select %p156, %s155, 63
      %s158 = smul.addr %s157, 8
      %s159 = scalar_lea.vmem %s2, %s158
      %s160 = smul.u32 32, %s14
      %v161 = vld [vmem:[%s147] sm:$0xff]
      %v162 = vld [vmem:[%s147 + $0x8] sm:$0xff]
      %v163 = vld [vmem:[%s147 + $0x10] sm:$0xff]
      %v164 = vld [vmem:[%s147 + $0x18] sm:$0xff]
      %v165 = vld [vmem:[%s147 + $0x20] sm:$0xff]
      %v166 = vld [vmem:[%s147 + $0x28] sm:$0xff]
      %v167 = vld [vmem:[%s147 + $0x30] sm:$0xff]
      %v168 = vld [vmem:[%s147 + $0x38] sm:$0xff]
      %v169 = vld [vmem:[%s147 + $0x40] sm:$0xff]
      %v170 = vld [vmem:[%s147 + $0x48] sm:$0xff]
      %v171 = vld [vmem:[%s147 + $0x50] sm:$0xff]
      %v172 = vld [vmem:[%s147 + $0x58] sm:$0xff]
      %v173 = vld [vmem:[%s147 + $0x60] sm:$0xff]
      %v174 = vld [vmem:[%s147 + $0x68] sm:$0xff]
      %v175 = vld [vmem:[%s147 + $0x70] sm:$0xff]
      %v176 = vld [vmem:[%s147 + $0x78] sm:$0xff]
      %v177 = vld [vmem:[%s147 + $0x80] sm:$0xff]
      %v178 = vld [vmem:[%s147 + $0x88] sm:$0xff]
      %v179 = vld [vmem:[%s147 + $0x90] sm:$0xff]
      %v180 = vld [vmem:[%s147 + $0x98] sm:$0xff]
      %v181 = vld [vmem:[%s147 + $0xa0] sm:$0xff]
      %v182 = vld [vmem:[%s147 + $0xa8] sm:$0xff]
      %v183 = vld [vmem:[%s147 + $0xb0] sm:$0xff]
      %v184 = vld [vmem:[%s147 + $0xb8] sm:$0xff]
      %v185 = vld [vmem:[%s147 + $0xc0] sm:$0xff]
      %v186 = vld [vmem:[%s147 + $0xc8] sm:$0xff]
      %v187 = vld [vmem:[%s147 + $0xd0] sm:$0xff]
      %v188 = vld [vmem:[%s147 + $0xd8] sm:$0xff]
      %v189 = vld [vmem:[%s147 + $0xe0] sm:$0xff]
      %v190 = vld [vmem:[%s147 + $0xe8] sm:$0xff]
      %v191 = vld [vmem:[%s147 + $0xf0] sm:$0xff]
      %v192 = vld [vmem:[%s147 + $0xf8] sm:$0xff]
      %vm193 = vcmask 48128
      %194 = vst.msk [vmem:[%s153] sm:$0xff] %vm193, %v161
      %195 = vst.msk [vmem:[%s153 + $0x8] sm:$0xff] %vm193, %v162
      %196 = vst.msk [vmem:[%s153 + $0x10] sm:$0xff] %vm193, %v163
      %197 = vst.msk [vmem:[%s153 + $0x18] sm:$0xff] %vm193, %v164
      %198 = vst.msk [vmem:[%s153 + $0x20] sm:$0xff] %vm193, %v165
      %199 = vst.msk [vmem:[%s153 + $0x28] sm:$0xff] %vm193, %v166
      %200 = vst.msk [vmem:[%s153 + $0x30] sm:$0xff] %vm193, %v167
      %201 = vst.msk [vmem:[%s153 + $0x38] sm:$0xff] %vm193, %v168
      %202 = vst.msk [vmem:[%s153 + $0x40] sm:$0xff] %vm193, %v169
      %203 = vst.msk [vmem:[%s153 + $0x48] sm:$0xff] %vm193, %v170
      %204 = vst.msk [vmem:[%s153 + $0x50] sm:$0xff] %vm193, %v171
      %205 = vst.msk [vmem:[%s153 + $0x58] sm:$0xff] %vm193, %v172
      %206 = vst.msk [vmem:[%s153 + $0x60] sm:$0xff] %vm193, %v173
      %207 = vst.msk [vmem:[%s153 + $0x68] sm:$0xff] %vm193, %v174
      %208 = vst.msk [vmem:[%s153 + $0x70] sm:$0xff] %vm193, %v175
      %209 = vst.msk [vmem:[%s153 + $0x78] sm:$0xff] %vm193, %v176
      %210 = vst.msk [vmem:[%s153 + $0x80] sm:$0xff] %vm193, %v177
      %211 = vst.msk [vmem:[%s153 + $0x88] sm:$0xff] %vm193, %v178
      %212 = vst.msk [vmem:[%s153 + $0x90] sm:$0xff] %vm193, %v179
      %213 = vst.msk [vmem:[%s153 + $0x98] sm:$0xff] %vm193, %v180
      %214 = vst.msk [vmem:[%s153 + $0xa0] sm:$0xff] %vm193, %v181
      %215 = vst.msk [vmem:[%s153 + $0xa8] sm:$0xff] %vm193, %v182
      %216 = vst.msk [vmem:[%s153 + $0xb0] sm:$0xff] %vm193, %v183
      %217 = vst.msk [vmem:[%s153 + $0xb8] sm:$0xff] %vm193, %v184
      %218 = vst.msk [vmem:[%s153 + $0xc0] sm:$0xff] %vm193, %v185
      %219 = vst.msk [vmem:[%s153 + $0xc8] sm:$0xff] %vm193, %v186
      %220 = vst.msk [vmem:[%s153 + $0xd0] sm:$0xff] %vm193, %v187
      %221 = vst.msk [vmem:[%s153 + $0xd8] sm:$0xff] %vm193, %v188
      %222 = vst.msk [vmem:[%s153 + $0xe0] sm:$0xff] %vm193, %v189
      %223 = vst.msk [vmem:[%s153 + $0xe8] sm:$0xff] %vm193, %v190
      %224 = vst.msk [vmem:[%s153 + $0xf0] sm:$0xff] %vm193, %v191
      %225 = vst.msk [vmem:[%s153 + $0xf8] sm:$0xff] %vm193, %v192
      %258 = vrot.lane.b32.xlu0 %v161, 122
      %v259 = vpop.permute.xlu0 %258
      %260 = vrot.lane.b32.xlu0 %v162, 122
      %v261 = vpop.permute.xlu0 %260
      %262 = vrot.lane.b32.xlu0 %v163, 122
      %v263 = vpop.permute.xlu0 %262
      %264 = vrot.lane.b32.xlu0 %v164, 122
      %v265 = vpop.permute.xlu0 %264
      %266 = vrot.lane.b32.xlu0 %v165, 122
      %v267 = vpop.permute.xlu0 %266
      %268 = vrot.lane.b32.xlu0 %v166, 122
      %v269 = vpop.permute.xlu0 %268
      %270 = vrot.lane.b32.xlu0 %v167, 122
      %v271 = vpop.permute.xlu0 %270
      %272 = vrot.lane.b32.xlu0 %v168, 122
      %v273 = vpop.permute.xlu0 %272
      %274 = vrot.lane.b32.xlu0 %v169, 122
      %v275 = vpop.permute.xlu0 %274
      %276 = vrot.lane.b32.xlu0 %v170, 122
      %v277 = vpop.permute.xlu0 %276
      %278 = vrot.lane.b32.xlu0 %v171, 122
      %v279 = vpop.permute.xlu0 %278
      %280 = vrot.lane.b32.xlu0 %v172, 122
      %v281 = vpop.permute.xlu0 %280
      %282 = vrot.lane.b32.xlu0 %v173, 122
      %v283 = vpop.permute.xlu0 %282
      %284 = vrot.lane.b32.xlu0 %v174, 122
      %v285 = vpop.permute.xlu0 %284
      %286 = vrot.lane.b32.xlu0 %v175, 122
      %v287 = vpop.permute.xlu0 %286
      %288 = vrot.lane.b32.xlu0 %v176, 122
      %v289 = vpop.permute.xlu0 %288
      %290 = vrot.lane.b32.xlu0 %v177, 122
      %v291 = vpop.permute.xlu0 %290
      %292 = vrot.lane.b32.xlu0 %v178, 122
      %v293 = vpop.permute.xlu0 %292
      %294 = vrot.lane.b32.xlu0 %v179, 122
      %v295 = vpop.permute.xlu0 %294
      %296 = vrot.lane.b32.xlu0 %v180, 122
      %v297 = vpop.permute.xlu0 %296
      %298 = vrot.lane.b32.xlu0 %v181, 122
      %v299 = vpop.permute.xlu0 %298
      %300 = vrot.lane.b32.xlu0 %v182, 122
      %v301 = vpop.permute.xlu0 %300
      %302 = vrot.lane.b32.xlu0 %v183, 122
      %v303 = vpop.permute.xlu0 %302
      %304 = vrot.lane.b32.xlu0 %v184, 122
      %v305 = vpop.permute.xlu0 %304
      %306 = vrot.lane.b32.xlu0 %v185, 122
      %v307 = vpop.permute.xlu0 %306
      %308 = vrot.lane.b32.xlu0 %v186, 122
      %v309 = vpop.permute.xlu0 %308
      %310 = vrot.lane.b32.xlu0 %v187, 122
      %v311 = vpop.permute.xlu0 %310
      %312 = vrot.lane.b32.xlu0 %v188, 122
      %v313 = vpop.permute.xlu0 %312
      %314 = vrot.lane.b32.xlu0 %v189, 122
      %v315 = vpop.permute.xlu0 %314
      %316 = vrot.lane.b32.xlu0 %v190, 122
      %v317 = vpop.permute.xlu0 %316
      %318 = vrot.lane.b32.xlu0 %v191, 122
      %v319 = vpop.permute.xlu0 %318
      %320 = vrot.lane.b32.xlu0 %v192, 122
      %v321 = vpop.permute.xlu0 %320
      %vm354 = vcmask 64512
      %355 = vst.msk [vmem:[%s159] sm:$0xff] %vm354, %v259
      %356 = vst.msk [vmem:[%s159 + $0x8] sm:$0xff] %vm354, %v261
      %357 = vst.msk [vmem:[%s159 + $0x10] sm:$0xff] %vm354, %v263
      %358 = vst.msk [vmem:[%s159 + $0x18] sm:$0xff] %vm354, %v265
      %359 = vst.msk [vmem:[%s159 + $0x20] sm:$0xff] %vm354, %v267
      %360 = vst.msk [vmem:[%s159 + $0x28] sm:$0xff] %vm354, %v269
      %361 = vst.msk [vmem:[%s159 + $0x30] sm:$0xff] %vm354, %v271
      %362 = vst.msk [vmem:[%s159 + $0x38] sm:$0xff] %vm354, %v273
      %363 = vst.msk [vmem:[%s159 + $0x40] sm:$0xff] %vm354, %v275
      %364 = vst.msk [vmem:[%s159 + $0x48] sm:$0xff] %vm354, %v277
      %365 = vst.msk [vmem:[%s159 + $0x50] sm:$0xff] %vm354, %v279
      %366 = vst.msk [vmem:[%s159 + $0x58] sm:$0xff] %vm354, %v281
      %367 = vst.msk [vmem:[%s159 + $0x60] sm:$0xff] %vm354, %v283
      %368 = vst.msk [vmem:[%s159 + $0x68] sm:$0xff] %vm354, %v285
      %369 = vst.msk [vmem:[%s159 + $0x70] sm:$0xff] %vm354, %v287
      %370 = vst.msk [vmem:[%s159 + $0x78] sm:$0xff] %vm354, %v289
      %371 = vst.msk [vmem:[%s159 + $0x80] sm:$0xff] %vm354, %v291
      %372 = vst.msk [vmem:[%s159 + $0x88] sm:$0xff] %vm354, %v293
      %373 = vst.msk [vmem:[%s159 + $0x90] sm:$0xff] %vm354, %v295
      %374 = vst.msk [vmem:[%s159 + $0x98] sm:$0xff] %vm354, %v297
      %375 = vst.msk [vmem:[%s159 + $0xa0] sm:$0xff] %vm354, %v299
      %376 = vst.msk [vmem:[%s159 + $0xa8] sm:$0xff] %vm354, %v301
      %377 = vst.msk [vmem:[%s159 + $0xb0] sm:$0xff] %vm354, %v303
      %378 = vst.msk [vmem:[%s159 + $0xb8] sm:$0xff] %vm354, %v305
      %379 = vst.msk [vmem:[%s159 + $0xc0] sm:$0xff] %vm354, %v307
      %380 = vst.msk [vmem:[%s159 + $0xc8] sm:$0xff] %vm354, %v309
      %381 = vst.msk [vmem:[%s159 + $0xd0] sm:$0xff] %vm354, %v311
      %382 = vst.msk [vmem:[%s159 + $0xd8] sm:$0xff] %vm354, %v313
      %383 = vst.msk [vmem:[%s159 + $0xe0] sm:$0xff] %vm354, %v315
      %384 = vst.msk [vmem:[%s159 + $0xe8] sm:$0xff] %vm354, %v317
      %385 = vst.msk [vmem:[%s159 + $0xf0] sm:$0xff] %vm354, %v319
      %386 = vst.msk [vmem:[%s159 + $0xf8] sm:$0xff] %vm354, %v321
      %s387 = smul.u32 32, %s14
      %p388 = scmp.lt.s32.totalorder %s387, 63
      %s389 = scalar_select %p388, %s387, 63
      %s390 = smul.addr %s389, 8
      %s391 = scalar_lea.vmem %s1, %s390
      %s392 = smul.u32 32, %s14
      %p393 = scmp.lt.s32.totalorder %s392, 63
      %s394 = scalar_select %p393, %s392, 63
      %s395 = smul.addr %s394, 8
      %s396 = scalar_lea.vmem %s2, %s395
      // Predicated region
      $region25: #{tpu_custom_call.1} parent=23 // pred_check
        %p397 = pneg %p58
      $region26: #{tpu_custom_call.1} parent=23 // pred_check_branch
        %399 = sbr.rel (%p397) target = $region28
      $region27: #{tpu_custom_call.1} parent=23 // pred_region
        %s400 = smul.u32 32, %s14
      $region28: #{tpu_custom_call.1} parent=23 // pred_fallthru
        _
      // Predicated region
      $region29: #{tpu_custom_call.1} parent=23 // pred_check
        %p401 = pneg %p84
      $region30: #{tpu_custom_call.1} parent=23 // pred_check_branch
        %403 = sbr.rel (%p401) target = $region32
      $region31: #{tpu_custom_call.1} parent=23 // pred_region
        %s404 = smul.u32 32, %s14
      $region32: #{tpu_custom_call.1} parent=23 // pred_fallthru
        _
    $region24: #{tpu_custom_call.1} parent=5 // pred_fallthru
      _
    %p405 = scmp.le.s32.totalorder 2, %s9
    // Predicated region
    $region33: #{tpu_custom_call.1} parent=5 // pred_check
      %p406 = pneg %p405
    $region34: #{tpu_custom_call.1} parent=5 // pred_check_branch
      %408 = sbr.rel (%p406) target = $region36
    $region35: #{tpu_custom_call.1} parent=5 // pred_region
      %s409 = ssub.s32 %s9, 2
      // Predicated region
      $region37: #{tpu_custom_call.1} parent=35 // pred_check
        %p410 = pneg %p64
      $region38: #{tpu_custom_call.1} parent=35 // pred_check_branch
        %412 = sbr.rel (%p410) target = $region40
      $region39: #{tpu_custom_call.1} parent=35 // pred_region
        %s413 = smul.u32 32, %s15
        %p414 = scmp.lt.s32.totalorder %s413, 63
        %s415 = scalar_select %p414, %s413, 63
        %s416 = smul.addr %s415, 8
        %s417 = scalar_lea.vmem %s1, %s416
      $region40: #{tpu_custom_call.1} parent=35 // pred_fallthru
        _
      // Predicated region
      $region41: #{tpu_custom_call.1} parent=35 // pred_check
        %p418 = pneg %p90
      $region42: #{tpu_custom_call.1} parent=35 // pred_check_branch
        %420 = sbr.rel (%p418) target = $region44
      $region43: #{tpu_custom_call.1} parent=35 // pred_region
        %s421 = smul.u32 32, %s15
        %p422 = scmp.lt.s32.totalorder %s421, 63
        %s423 = scalar_select %p422, %s421, 63
        %s424 = smul.addr %s423, 8
        %s425 = scalar_lea.vmem %s2, %s424
      $region44: #{tpu_custom_call.1} parent=35 // pred_fallthru
        _
    $region36: #{tpu_custom_call.1} parent=5 // pred_fallthru
      _
  $region6: #{tpu_custom_call.1} parent=0 // loop_footer
    %s13 = sadd.s32 1, %s9
  $region7: #{tpu_custom_call.1} parent=0 // loop_footer_branch
    %8 = sbr.rel target = $region3
  $region8: #{tpu_custom_call.1} parent=0 // loop_exit
    _

</llo_original>
